<compile_context>
chip_gen: v7x
topology: tpu7x:2x2x1
jax: 0.10.0
libtpu: 0.0.40
codegen_flags: <defaults>
</compile_context>

<pallas_src>
import functools
import math

import jax
import jax.numpy as jnp
from jax.experimental import pallas as pl
from jax.experimental.pallas import tpu as pltpu

_LANE = 128


def _round_up(x: int, m: int) -> int:
    return ((x + m - 1) // m) * m


def _min_sublane(dtype) -> int:
    itemsize = jnp.dtype(dtype).itemsize
    return 8 if itemsize >= 4 else (16 if itemsize == 2 else 32)


def _vmem_capacity_bytes() -> int:
    try:
        return int(pltpu.get_tpu_info().vmem_capacity_bytes)
    except Exception:
        return 64 * 1024 * 1024  # conservative: v7x per-TensorCore VMEM


def _choose_nk_tiles(out_f: int, in_f: int, w_itemsize: int, x_itemsize: int):
    """Pick (tn, tk, vmem_limit_bytes) from the shape + this chip's VMEM."""
    vmem_cap = _vmem_capacity_bytes()
    # Working-set budget (2x-buffered x & w tiles, 2x-buffered output, f32
    # accumulator) with headroom for compiler scratch / deeper pipelining:
    # ~21 MiB on v7x (64 MiB/TC), 40 MiB on v5e/v6e (128 MiB physical).
    budget = min(vmem_cap // 3, 40 << 20)
    tm_max = 512  # worst-case M tile, only used to bound the footprint

    def footprint(tn, tk):
        return (2 * tm_max * tk * x_itemsize      # x tiles (double-buffered)
                + 2 * tk * tn * w_itemsize        # w tiles (double-buffered)
                + 2 * tm_max * tn * 4             # output tiles
                + tm_max * tn * 4)                # f32 accumulator (worst case)

    tn = min(_round_up(out_f, _LANE), 512)        # 256-multiples preferred on v6e/v7x

    # Prefer keeping the full contraction dim resident: single K step, no K
    # padding of x per call, no accumulator revisits.
    if footprint(tn, in_f) <= budget:
        tk = in_f
    else:
        tk = min(_round_up(in_f, _LANE), 2048)
        while footprint(tn, tk) > budget and tk > _LANE:
            tk = max((tk // 2) // _LANE * _LANE, _LANE)
        while footprint(tn, tk) > budget and tn > _LANE:
            tn = max((tn // 2) // _LANE * _LANE, _LANE)

    vmem_limit = min(vmem_cap * 3 // 4, 96 << 20)
    return tn, tk, vmem_limit


def _fc_kernel_inplace(x_ref, w_ref, b_ref, o_ref, *, activation, mxu_dtype):
    """f32-output kernel: accumulate directly into o_ref (no scratch, no copy)."""
    k = pl.program_id(2)

    @pl.when(k == 0)
    def _():
        o_ref[...] = jnp.zeros_like(o_ref)

    a = x_ref[...]
    w = w_ref[...]
    if mxu_dtype is not None:
        a = a.astype(mxu_dtype)
        w = w.astype(mxu_dtype)
    o_ref[...] += jnp.dot(a, w, preferred_element_type=jnp.float32)

    @pl.when(k == pl.num_programs(2) - 1)
    def _():
        out = o_ref[...] + b_ref[...]          # f32 epilogue, (1, tn) broadcast
        if activation:
            out = jnp.maximum(out, 0.0)
        o_ref[...] = out


def _fc_kernel_acc(x_ref, w_ref, b_ref, o_ref, acc_ref, *, activation, mxu_dtype):
    """Narrow-output kernel: f32 scratch accumulator, cast only at the store."""
    k = pl.program_id(2)

    @pl.when(k == 0)
    def _():
        acc_ref[...] = jnp.zeros_like(acc_ref)

    a = x_ref[...]
    w = w_ref[...]
    if mxu_dtype is not None:
        a = a.astype(mxu_dtype)
        w = w.astype(mxu_dtype)
    acc_ref[...] += jnp.dot(a, w, preferred_element_type=jnp.float32)

    @pl.when(k == pl.num_programs(2) - 1)
    def _():
        out = acc_ref[...] + b_ref[...]
        if activation:
            out = jnp.maximum(out, 0.0)
        o_ref[...] = out.astype(o_ref.dtype)


@functools.partial(
    jax.jit,
    static_argnames=("out_f", "in_f", "tn", "tk", "activation", "mxu_dtype",
                     "vmem_limit", "force_pallas"))
def _fc_apply(x, w_p, b_p, *, out_f, in_f, tn, tk, activation, mxu_dtype,
              vmem_limit, force_pallas):
    assert x.shape[-1] == in_f
    lead = x.shape[:-1]
    x2 = x.reshape(-1, in_f)
    B = x2.shape[0]

    # Tiny-shape fallback: per-call / per-grid-step overhead dominates, plain
    # XLA wins.  The demo forces the Pallas path so the kernel is exercised.
    if not force_pallas and B * out_f * in_f < (1 << 18):
        out = jnp.dot(x2, w_p[:in_f, :out_f].astype(x2.dtype)) + b_p[0, :out_f]
        if activation:
            out = jnp.maximum(out, 0.0)
        return out.astype(x.dtype).reshape(lead + (out_f,))

    Kp, Np = w_p.shape
    sub = _min_sublane(x2.dtype)
    tm = min(_round_up(B, sub), 512)
    Mp = _round_up(B, tm)

    # v7x has 2 TensorCores: ensure at least one "parallel" axis has >=2
    # blocks to shard (only when tn can stay a 128 multiple).  Harmless on
    # single-TC generations.
    tn_eff = tn
    if Mp // tm == 1 and Np // tn_eff == 1 and tn_eff >= 256 and tn_eff % 256 == 0:
        tn_eff //= 2

    # Pad activations along M (and K only when K is tiled); zeros are neutral
    # for matmul / bias / ReLU and the padded region is sliced away below.
    x_p = jnp.pad(x2, ((0, Mp - B), (0, Kp - in_f)))

    grid = (Mp // tm, Np // tn_eff, Kp // tk)

    out_dtype = x2.dtype
    if out_dtype == jnp.float32:
        kernel = functools.partial(_fc_kernel_inplace, activation=activation,
                                   mxu_dtype=mxu_dtype)
        scratch = []
    else:
        kernel = functools.partial(_fc_kernel_acc, activation=activation,
                                   mxu_dtype=mxu_dtype)
        scratch = [pltpu.VMEM((tm, tn_eff), jnp.float32)]

    cost = pl.CostEstimate(
        flops=2 * Mp * Np * Kp,
        transcendentals=0,
        bytes_accessed=int(x_p.size * x_p.dtype.itemsize
                           + w_p.size * w_p.dtype.itemsize
                           + Mp * Np * jnp.dtype(out_dtype).itemsize),
    )

    out_p = pl.pallas_call(
        kernel,
        out_shape=jax.ShapeDtypeStruct((Mp, Np), out_dtype),
        grid_spec=pltpu.PrefetchScalarGridSpec(
            num_scalar_prefetch=0,
            grid=grid,
            in_specs=[
                pl.BlockSpec((tm, tk), lambda i, j, k: (i, k)),      # x  (M, K)
                pl.BlockSpec((tk, tn_eff), lambda i, j, k: (k, j)),  # w  (K, N)
                pl.BlockSpec((1, tn_eff), lambda i, j, k: (0, j)),   # bias
            ],
            out_specs=pl.BlockSpec((tm, tn_eff), lambda i, j, k: (i, j)),
            scratch_shapes=scratch,
        ),
        compiler_params=pltpu.CompilerParams(
            dimension_semantics=("parallel", "parallel", "arbitrary"),
            vmem_limit_bytes=vmem_limit,
        ),
        cost_estimate=cost,
    )(x_p, w_p, b_p)

    return out_p[:B, :out_f].reshape(lead + (out_f,))


def make_fully_connected(weight, bias=None, *, activation=True, mxu_dtype=None,
                         force_pallas=False, tile_n=None, tile_k=None):
    """One-time parameter prep for the FullyConnected layer.

    weight: (out_features, in_features) -- PyTorch nn.Linear convention.
    bias:   (out_features,) or None.
    mxu_dtype: e.g. jnp.bfloat16 to run the MXU in bf16 with f32 accumulate
      (weight stored bf16 in HBM, halving its traffic).  Gate on tolerance.
    Returns apply(x) computing x @ weight.T + bias (+ ReLU if activation).
    """
    weight = jnp.asarray(weight)
    out_f, in_f = weight.shape
    if bias is None:
        bias = jnp.zeros((out_f,), jnp.float32)
    bias = jnp.asarray(bias)

    w_store = jnp.dtype(mxu_dtype) if mxu_dtype is not None else jnp.dtype(weight.dtype)
    tn, tk, vmem_limit = _choose_nk_tiles(out_f, in_f, w_store.itemsize,
                                          jnp.dtype(weight.dtype).itemsize)
    if tile_n is not None:
        assert tile_n % _LANE == 0, "tile_n must be a multiple of 128"
        tn = int(tile_n)
    if tile_k is not None:
        assert tile_k == in_f or tile_k % _LANE == 0, \
            "tile_k must equal in_features or be a multiple of 128"
        tk = int(tile_k)

    Np = _round_up(out_f, tn)
    Kp = _round_up(in_f, tk)

    # One-time weight transpose to (K, N) + pad + optional cast, hoisted OUT
    # of the per-call hot path.
    w_p = jnp.pad(weight.T, ((0, Kp - in_f), (0, Np - out_f)))
    if mxu_dtype is not None:
        w_p = w_p.astype(mxu_dtype)
    b_p = jnp.pad(bias.astype(jnp.float32), (0, Np - out_f)).reshape(1, Np)

    return functools.partial(
        _fc_apply, w_p=w_p, b_p=b_p, out_f=out_f, in_f=in_f, tn=tn, tk=tk,
        activation=bool(activation), mxu_dtype=mxu_dtype,
        vmem_limit=int(vmem_limit), force_pallas=bool(force_pallas))


def xavier_uniform(key, shape, dtype=jnp.float32):
    # torch.nn.init.xavier_uniform_: U(-a, a), a = sqrt(6 / (fan_in + fan_out))
    fan_out, fan_in = shape  # weight shape is (out_features, in_features)
    a = math.sqrt(6.0 / (fan_in + fan_out))
    return jax.random.uniform(key, shape, dtype=dtype, minval=-a, maxval=a)


if __name__ == "__main__":
    key = jax.random.PRNGKey(0)
    k_x, k_w, k_x2, k_w2 = jax.random.split(key, 4)

    # ---- Case A: module-sized layer (8 x 32 -> 64), Pallas path forced ----
    batch, in_features, out_features = 8, 32, 64
    x = jax.random.normal(k_x, (batch, in_features), dtype=jnp.float32)
    weight = xavier_uniform(k_w, (out_features, in_features))
    bias = jnp.zeros((out_features,), dtype=jnp.float32)

    fc_relu = make_fully_connected(weight, bias, activation=True, force_pallas=True)
    out = jax.block_until_ready(fc_relu(x))
    ref = jnp.maximum(x @ weight.T + bias, 0.0)
    assert out.shape == (batch, out_features)
    assert jnp.allclose(out, ref, atol=1e-5, rtol=1e-5)

    # activation_fn=None path
    fc_lin = make_fully_connected(weight, bias, activation=False, force_pallas=True)
    out_lin = jax.block_until_ready(fc_lin(x))
    assert jnp.allclose(out_lin, x @ weight.T + bias, atol=1e-5, rtol=1e-5)

    # tiny-shape fallback path (plain XLA; no Pallas launch at this size)
    fc_small = make_fully_connected(weight, bias, activation=True)
    out_small = jax.block_until_ready(fc_small(x))
    assert jnp.allclose(out_small, ref, atol=1e-5, rtol=1e-5)

    # ---- Case B: exercises M/N padding + multi-step K accumulation (2x2x2 grid) ----
    B2, in2, out2 = 528, 256, 192
    x2 = jax.random.normal(k_x2, (B2, in2), dtype=jnp.float32)
    w2 = xavier_uniform(k_w2, (out2, in2))
    b2 = 0.1 * jax.random.normal(key, (out2,), dtype=jnp.float32)
    fc2 = make_fully_connected(w2, b2, activation=True, force_pallas=True,
                               tile_n=128, tile_k=128)
    o2 = jax.block_until_ready(fc2(x2))
    r2 = jnp.maximum(x2 @ w2.T + b2, 0.0)
    assert o2.shape == (B2, out2)
    assert jnp.allclose(o2, r2, atol=1e-4, rtol=1e-4)

    print("KERNEL_OK")
</pallas_src>

<mosaic_0001>
module attributes {stable_mosaic.version = 11 : i64} {
  func.func @_fc_kernel_inplace(%arg0: i32, %arg1: i32, %arg2: i32, %arg3: memref<8x32xf32, #tpu.memory_space<vmem>>, %arg4: memref<32x128xf32, #tpu.memory_space<vmem>>, %arg5: memref<1x128xf32, #tpu.memory_space<vmem>>, %arg6: memref<8x128xf32, #tpu.memory_space<vmem>>) attributes {dimension_semantics = [#tpu.dimension_semantics<parallel>, #tpu.dimension_semantics<parallel>, #tpu.dimension_semantics<arbitrary>], iteration_bounds = array<i64: 1, 1, 1>, scalar_prefetch = 0 : i64, scratch_operands = 0 : i64, tpu.core_type = #tpu.core_type<tc>, window_params = [{transform_indices = @transform_0, window_bounds = array<i64: 8, 32>}, {transform_indices = @transform_1, window_bounds = array<i64: 32, 128>}, {transform_indices = @transform_2, window_bounds = array<i64: 1, 128>}, {transform_indices = @transform_3, window_bounds = array<i64: 8, 128>}]} {
    %c0_i32 = arith.constant 0 : i32
    %0 = arith.cmpi eq, %arg2, %c0_i32 : i32
    %1 = arith.extui %0 : i1 to i32
    %c0_i32_0 = arith.constant 0 : i32
    %2 = arith.cmpi ne, %1, %c0_i32_0 : i32
    scf.if %2 {
      %cst_10 = arith.constant 0.000000e+00 : f32
      %12 = vector.broadcast %cst_10 : f32 to vector<8x128xf32>
      %c0_11 = arith.constant 0 : index
      %c0_12 = arith.constant 0 : index
      %13 = vector.load %arg6[%c0_11, %c0_12] : memref<8x128xf32, #tpu.memory_space<vmem>>, vector<8x128xf32>
      tpu.vector_store %arg6[%c0_11, %c0_12], %12 {strides = array<i32>} : memref<8x128xf32, #tpu.memory_space<vmem>>, vector<8x128xf32>,
    } else {
    }
    %c0 = arith.constant 0 : index
    %c0_1 = arith.constant 0 : index
    %3 = vector.load %arg3[%c0, %c0_1] : memref<8x32xf32, #tpu.memory_space<vmem>>, vector<8x32xf32>
    %c0_2 = arith.constant 0 : index
    %c0_3 = arith.constant 0 : index
    %4 = vector.load %arg4[%c0_2, %c0_3] : memref<32x128xf32, #tpu.memory_space<vmem>>, vector<32x128xf32>
    %c0_4 = arith.constant 0 : index
    %c0_5 = arith.constant 0 : index
    %5 = vector.load %arg6[%c0_4, %c0_5] : memref<8x128xf32, #tpu.memory_space<vmem>>, vector<8x128xf32>
    %cst = arith.constant dense<0.000000e+00> : vector<8x128xf32>
    %6 = tpu.matmul %3, %4, %cst {dimension_numbers = #tpu.dot_dimension_numbers<[1], [0], [0], [1], [0, 0, 1, 1], [], []>} : vector<8x32xf32>, vector<32x128xf32>, vector<8x128xf32> -> vector<8x128xf32>
    %7 = arith.addf %5, %6 : vector<8x128xf32>
    %c0_6 = arith.constant 0 : index
    %c0_7 = arith.constant 0 : index
    %8 = vector.load %arg6[%c0_6, %c0_7] : memref<8x128xf32, #tpu.memory_space<vmem>>, vector<8x128xf32>
    tpu.vector_store %arg6[%c0_6, %c0_7], %7 {strides = array<i32>} : memref<8x128xf32, #tpu.memory_space<vmem>>, vector<8x128xf32>,
    %c0_i32_8 = arith.constant 0 : i32
    %9 = arith.cmpi eq, %arg2, %c0_i32_8 : i32
    %10 = arith.extui %9 : i1 to i32
    %c0_i32_9 = arith.constant 0 : i32
    %11 = arith.cmpi ne, %10, %c0_i32_9 : i32
    scf.if %11 {
      %c0_10 = arith.constant 0 : index
      %c0_11 = arith.constant 0 : index
      %12 = vector.load %arg6[%c0_10, %c0_11] : memref<8x128xf32, #tpu.memory_space<vmem>>, vector<8x128xf32>
      %c0_12 = arith.constant 0 : index
      %c0_13 = arith.constant 0 : index
      %13 = vector.load %arg5[%c0_12, %c0_13] : memref<1x128xf32, #tpu.memory_space<vmem>>, vector<1x128xf32>
      %14 = vector.broadcast %13 : vector<1x128xf32> to vector<8x128xf32>
      %15 = arith.addf %12, %14 : vector<8x128xf32>
      %cst_14 = arith.constant 0.000000e+00 : f32
      %16 = vector.broadcast %cst_14 : f32 to vector<8x128xf32>
      %17 = arith.maximumf %15, %16 : vector<8x128xf32>
      %c0_15 = arith.constant 0 : index
      %c0_16 = arith.constant 0 : index
      %18 = vector.load %arg6[%c0_15, %c0_16] : memref<8x128xf32, #tpu.memory_space<vmem>>, vector<8x128xf32>
      tpu.vector_store %arg6[%c0_15, %c0_16], %17 {strides = array<i32>} : memref<8x128xf32, #tpu.memory_space<vmem>>, vector<8x128xf32>,
    } else {
    }
    return
  }
  func.func @transform_0(%arg0: i32, %arg1: i32, %arg2: i32) -> (i32, i32) {
    %c0_i32 = arith.constant 0 : i32
    return %arg0, %arg2 : i32, i32
  }
  func.func @transform_1(%arg0: i32, %arg1: i32, %arg2: i32) -> (i32, i32) {
    %c0_i32 = arith.constant 0 : i32
    return %arg2, %arg1 : i32, i32
  }
  func.func @transform_2(%arg0: i32, %arg1: i32, %arg2: i32) -> (i32, i32) {
    %c0_i32 = arith.constant 0 : i32
    %c0_i32_0 = arith.constant 0 : i32
    return %c0_i32, %arg1 : i32, i32
  }
  func.func @transform_3(%arg0: i32, %arg1: i32, %arg2: i32) -> (i32, i32) {
    %c0_i32 = arith.constant 0 : i32
    return %arg0, %arg1 : i32, i32
  }
}

</mosaic_0001>

<llo_original>
// kernel: _fc_apply.1
$region0: #{_fc_apply.1}
  #allocation0 [shape = 'u32[]', space=smem, size = 0x4, offset = 0x4, fixed_abs, tag = 'smem constant byte address 0x4 - core index']
  #allocation1 [shape = 'u32[144,128]{1,0:T(1,128)}', space=vmem, size = 0x12000, scoped, tag = 'internal scratch']
  %s0 = inlined_call_operand.hbm [shape: f32[8,32], index: 0, kind: input, shape index: {}]
  %s1 = inlined_call_operand.hbm [shape: f32[32,128], index: 1, kind: input, shape index: {}]
  %s2 = inlined_call_operand.vmem [shape: f32[1,128], index: 2, kind: input, shape index: {}]
  %s3 = inlined_call_operand.hbm [shape: f32[8,128], index: 3, kind: output, shape index: {}]
  %s4 = sld [smem:[#allocation0]]
  $region38: #{_fc_apply.1} parent=0
    _
  %s6 = ssub.s32 1, %s4
  %s7 = scalar_select 0, %s6, %s4
  $region1: #{_fc_apply.1} parent=0
    #allocation2 [shape = 'u8[4096]{0}', space=vmem, size = 0x1000, scoped, tag = 'input window, operand 0, single buffered']
    #allocation3 [shape = 's32[1]{0}', space=sflag, size = 0x4, scoped, tag = 'scoped memory for _fc_apply.1']
    #allocation4 [shape = 's32[1]{0}', space=sflag, size = 0x4, scoped, tag = 'scoped memory for _fc_apply.1']
    #allocation5 [shape = 'u8[16384]{0}', space=vmem, size = 0x4000, scoped, tag = 'input window, operand 1, single buffered']
    #allocation6 [shape = 's32[1]{0}', space=sflag, size = 0x4, scoped, tag = 'scoped memory for _fc_apply.1']
    #allocation7 [shape = 'u8[4096]{0}', space=vmem, size = 0x1000, scoped, tag = 'output window, operand 0, single buffered']
    %8 = vsyncpa [#allocation3], 0
    %9 = vsyncpa [#allocation6], 0
    %10 = vsyncpa [#allocation4], 0
    // Predicated region
    $region2: #{_fc_apply.1} parent=1 // pred_check
      _
    $region3: #{_fc_apply.1} parent=1 // pred_check_branch
      %12 = sbr.rel (0) target = $region5
    $region4: #{_fc_apply.1} parent=1 // pred_region
      %s14 = ssub.s32 128, 128
      %15 = vsyncadd [#allocation3], %s14
      %s17 = sshll.u32 [#allocation2], 4
      %s18 = int_to_ptr.vmem [resolvable:$true] %s17
      %20 = dma.hbm_to_vmem [thread:$0]  %s0, 128, %s18, [#allocation3]
    $region5: #{_fc_apply.1} parent=1 // pred_fallthru
      _
    // Predicated region
    $region6: #{_fc_apply.1} parent=1 // pred_check
      _
    $region7: #{_fc_apply.1} parent=1 // pred_check_branch
      %22 = sbr.rel (0) target = $region9
    $region8: #{_fc_apply.1} parent=1 // pred_region
      %s24 = ssub.s32 512, 512
      %25 = vsyncadd [#allocation6], %s24
      %s26 = sshll.u32 [#allocation5], 4
      %s27 = int_to_ptr.vmem [resolvable:$true] %s26
      %32 = dma.hbm_to_vmem [thread:$0]  %s1, 512, %s27, [#allocation6], 128, 128, 8
    $region9: #{_fc_apply.1} parent=1 // pred_fallthru
      _
    // Predicated region
    $region10: #{_fc_apply.1} parent=1 // pred_check
      _
    $region11: #{_fc_apply.1} parent=1 // pred_check_branch
      %34 = sbr.rel (0) target = $region13
    $region12: #{_fc_apply.1} parent=1 // pred_region
      _
    $region13: #{_fc_apply.1} parent=1 // pred_fallthru
      _
    // Predicated region
    $region14: #{_fc_apply.1} parent=1 // pred_check
      _
    $region15: #{_fc_apply.1} parent=1 // pred_check_branch
      %36 = sbr.rel (0) target = $region17
    $region16: #{_fc_apply.1} parent=1 // pred_region
      %37 = dma.done [#allocation3], 128
    $region17: #{_fc_apply.1} parent=1 // pred_fallthru
      _
    // Predicated region
    $region18: #{_fc_apply.1} parent=1 // pred_check
      _
    $region19: #{_fc_apply.1} parent=1 // pred_check_branch
      %39 = sbr.rel (0) target = $region21
    $region20: #{_fc_apply.1} parent=1 // pred_region
      %40 = dma.done [#allocation6], 512
    $region21: #{_fc_apply.1} parent=1 // pred_fallthru
      _
    %p41 = scmp.eq.s32.totalorder 0, 0
    // Predicated region
    $region22: #{_fc_apply.1} parent=1 // pred_check
      %p42 = pneg %p41
    $region23: #{_fc_apply.1} parent=1 // pred_check_branch
      %44 = sbr.rel (%p42) target = $region25
    $region24: #{_fc_apply.1} parent=1 // pred_region
      %45 = vst [vmem:[#allocation7] sm:$0xff] 0.0
    $region25: #{_fc_apply.1} parent=1 // pred_fallthru
      _
    %v46 = vld [vmem:[#allocation2] sm:$0xff]
    %v47 = vld [vmem:[#allocation5] sm:$0xff]
    %v48 = vld [vmem:[#allocation5 + $0x8] sm:$0xff]
    %v49 = vld [vmem:[#allocation5 + $0x10] sm:$0xff]
    %v50 = vld [vmem:[#allocation5 + $0x18] sm:$0xff]
    %v51 = vld [vmem:[#allocation7] sm:$0xff]
    %vm52 = vcmask 261120
    %v54 = vsel %vm52, %v46, 0
    %56 = vmatprep.subr.mxu0 0.0
    %57 = vmatpush1.msra.mxu0 %v47
    %58 = vmatprep.subr.mxu0 0.0
    %59 = vmatpush1.msra.mxu0 %v48
    %60 = vmatprep.subr.mxu0 0.0
    %61 = vmatpush1.msra.mxu0 %v49
    %62 = vmatprep.subr.mxu0 0.0
    %63 = vmatpush1.msra.mxu0 %v50
    %64 = vmatprep.subr.mxu0 0.0
    %65 = vmatpush1.msra.mxu0 0.0
    %66 = vmatprep.subr.mxu0 0.0
    %67 = vmatpush1.msra.mxu0 0.0
    %68 = vmatprep.subr.mxu0 0.0
    %69 = vmatpush1.msra.mxu0 0.0
    %70 = vmatprep.subr.mxu0 0.0
    %71 = vmatpush1.msra.mxu0 0.0
    %72 = vmatprep.subr.mxu0 0.0
    %73 = vmatpush1.msra.mxu0 0.0
    %74 = vmatprep.subr.mxu0 0.0
    %75 = vmatpush1.msra.mxu0 0.0
    %76 = vmatprep.subr.mxu0 0.0
    %77 = vmatpush1.msra.mxu0 0.0
    %78 = vmatprep.subr.mxu0 0.0
    %79 = vmatpush1.msra.mxu0 0.0
    %80 = vmatprep.subr.mxu0 0.0
    %81 = vmatpush1.msra.mxu0 0.0
    %82 = vmatprep.subr.mxu0 0.0
    %83 = vmatpush1.msra.mxu0 0.0
    %84 = vmatprep.subr.mxu0 0.0
    %85 = vmatpush1.msra.mxu0 0.0
    %86 = vmatprep.subr.mxu0 0.0
    %87 = vmatpush1.msra.mxu0 0.0
    %88 = vmatprep.subr.mxu0 0.0
    %89 = vmatpush1.msra.mxu0 0.0
    %90 = vmatprep.subr.mxu0 0.0
    %91 = vmatpush1.msra.mxu0 0.0
    %92 = vmatprep.subr.mxu0 0.0
    %93 = vmatpush1.msra.mxu0 0.0
    %94 = vmatprep.subr.mxu0 0.0
    %95 = vmatpush1.msra.mxu0 0.0
    %96 = vmatprep.subr.mxu0 0.0
    %97 = vmatpush1.msra.mxu0 0.0
    %98 = vmatprep.subr.mxu0 0.0
    %99 = vmatpush1.msra.mxu0 0.0
    %100 = vmatprep.subr.mxu0 0.0
    %101 = vmatpush1.msra.mxu0 0.0
    %102 = vmatprep.subr.mxu0 0.0
    %103 = vmatpush1.msra.mxu0 0.0
    %104 = vmatprep.subr.mxu0 0.0
    %105 = vmatpush1.msra.mxu0 0.0
    %106 = vmatprep.subr.mxu0 0.0
    %107 = vmatpush1.msra.mxu0 0.0
    %108 = vmatprep.subr.mxu0 0.0
    %109 = vmatpush1.msra.mxu0 0.0
    %110 = vmatprep.subr.mxu0 0.0
    %111 = vmatpush1.msra.mxu0 0.0
    %112 = vmatprep.subr.mxu0 0.0
    %113 = vmatpush1.msra.mxu0 0.0
    %114 = vmatprep.subr.mxu0 0.0
    %115 = vmatpush1.msra.mxu0 0.0
    %116 = vmatprep.subr.mxu0 0.0
    %117 = vmatpush1.msra.mxu0 0.0
    %118 = vmatprep.subr.mxu0 0.0
    %119 = vmatpush1.msra.mxu0 0.0
    %120 = vmatprep.mubr.f32.mxu0 0.0
    %121 = vmatmul.mubr.f32.gmra.mrb[0].mxu0 %v54
    %v122 = vpop.f32.mrb[0].mxu0
    %v123 = vadd.f32 0.0, %v122
    %v124 = vpop.f32.mrb[0].mxu0
    %125 = vdwg.mxu0
    %v126 = vadd.f32 %v51, %v123
    %127 = vst [vmem:[#allocation7] sm:$0xff] %v126
    // Predicated region
    $region26: #{_fc_apply.1} parent=1 // pred_check
      %p128 = pneg %p41
    $region27: #{_fc_apply.1} parent=1 // pred_check_branch
      %130 = sbr.rel (%p128) target = $region29
    $region28: #{_fc_apply.1} parent=1 // pred_region
      %v131 = vld [vmem:[#allocation7] sm:$0xff]
      %v132 = vld [vmem:[%s2] sm:$0x1]
      %v134 = vlaneseq
      %v135 = vshrl.u32 %v134, 7
      %v136 = vsub.s32 0, %v135
      %v137 = vrot.slane %v132, %v136
      %v139 = vadd.f32 %v131, %v137
      %v140 = vmax.f32 %v139, 0.0
      %141 = vst [vmem:[#allocation7] sm:$0xff] %v140
    $region29: #{_fc_apply.1} parent=1 // pred_fallthru
      _
    // Predicated region
    $region30: #{_fc_apply.1} parent=1 // pred_check
      _
    $region31: #{_fc_apply.1} parent=1 // pred_check_branch
      %143 = sbr.rel (0) target = $region33
    $region32: #{_fc_apply.1} parent=1 // pred_region
      %s145 = ssub.s32 128, 128
      %146 = vsyncadd [#allocation4], %s145
      %s148 = sshll.u32 [#allocation7], 4
      %s149 = int_to_ptr.vmem [resolvable:$true] %s148
      %151 = dma.vmem_to_hbm [thread:$0]  %s149, 128, %s3, [#allocation4]
    $region33: #{_fc_apply.1} parent=1 // pred_fallthru
      _
    // Predicated region
    $region34: #{_fc_apply.1} parent=1 // pred_check
      _
    $region35: #{_fc_apply.1} parent=1 // pred_check_branch
      %153 = sbr.rel (0) target = $region37
    $region36: #{_fc_apply.1} parent=1 // pred_region
      %154 = dma.done [#allocation4], 128
    $region37: #{_fc_apply.1} parent=1 // pred_fallthru
      _
    %155 = vsyncpa [#allocation3], 1
    %156 = vsyncpa [#allocation6], 1
    %157 = vsyncpa [#allocation4], 1

</llo_original>
